<compile_context>
chip_gen: v6e
topology: v6e:2x2x1
jax: 0.10.0
libtpu: 0.0.40
codegen_flags: <defaults>
</compile_context>

<pallas_src>
import functools

import jax
import jax.numpy as jnp
from jax.experimental import pallas as pl
from jax.experimental.pallas import tpu as pltpu


def _round_up(n, m):
    return ((n + m - 1) // m) * m


def _vmem_capacity_bytes():
    """Physical VMEM per TensorCore (128 MiB on v5e/v6e, 64 MiB on v7x)."""
    try:
        info = pltpu.get_tpu_info()
        cap = getattr(info, "vmem_capacity_bytes", None)
        if cap:
            return int(cap)
    except Exception:
        pass
    return 64 * 1024 * 1024  # conservative (v7x-sized) if the query fails


def _vmem_budget_and_limit():
    """(tile-picker budget, vmem_limit_bytes), kept consistent with each other."""
    cap = _vmem_capacity_bytes()
    if cap >= 128 * 1024 * 1024:            # v5e / v6e: 128 MiB VMEM
        budget = 96 * 1024 * 1024
    else:                                    # v7x: 64 MiB per TC (or unknown)
        budget = 40 * 1024 * 1024
    return budget, budget + 4 * 1024 * 1024


def _const_block_spec(shape, index_map, single_buffer):
    """BlockSpec for a grid-invariant operand (weights / bias).

    Double-buffering a block whose index_map is constant only burns VMEM, so we
    request a single buffer; callers fall back to the default if this JAX/Mosaic
    build does not honor pipeline_mode on pallas_call BlockSpecs.
    """
    if single_buffer:
        return pl.BlockSpec(shape, index_map, pipeline_mode=pl.Buffered(1))
    return pl.BlockSpec(shape, index_map)


def _call_with_buffering_fallback(build_fn, *args):
    """Run build_fn(True)(*args); retry with default buffering if it is rejected."""
    try:
        return build_fn(True)(*args)
    except Exception:
        return build_fn(False)(*args)


def _conv_direct_kernel(x_ref, w_ref, b_ref, o_ref, *, K, dilation, T_out, has_bias):
    """Direct conv for one batch element (stride == 1).

    x_ref : (1, T_xp, C_in)    time-padded input rows, resident in VMEM
    w_ref : (K, C_in, C_out)   per-tap weights (grid-invariant)
    b_ref : (1, C_out)         f32 bias (grid-invariant)
    o_ref : (1, T_out, C_out)  output rows

    In-kernel im2col: the K taps are K shifted static slices of the x block
    feeding K MXU dots accumulated in f32 -- nothing K-times larger touches HBM.
    """
    acc = jnp.dot(x_ref[0, 0:T_out, :], w_ref[0],
                  preferred_element_type=jnp.float32)
    for j in range(1, K):
        s = j * dilation
        acc = acc + jnp.dot(x_ref[0, s:s + T_out, :], w_ref[j],
                            preferred_element_type=jnp.float32)
    if has_bias:
        acc = acc + b_ref[...]
    o_ref[0] = acc.astype(o_ref.dtype)


def _conv_im2col_kernel(x_ref, w_ref, b_ref, o_ref, *, has_bias):
    """One M-tile of the folded conv-as-matmul (fallback path).

    x_ref : (tm, Kc)       im2col rows for this tile
    w_ref : (Kc, C_out)    folded weights (grid-invariant)
    b_ref : (1, C_out)     f32 bias
    o_ref : (tm, C_out)    output tile
    """
    acc = jnp.dot(x_ref[...], w_ref[...], preferred_element_type=jnp.float32)
    if has_bias:
        acc = acc + b_ref[...]
    o_ref[...] = acc.astype(o_ref.dtype)


def _pick_tile_m(m_rows, kc, co, in_bytes, out_bytes, budget_bytes):
    """Largest M-tile whose pipelined VMEM footprint fits, with a padding-waste cap."""
    m_align = _round_up(max(m_rows, 1), 8)
    candidates = [t for t in (4096, 2048, 1024, 512, 256, 128, 64, 32, 16, 8)
                  if t <= m_align]
    if not candidates:
        candidates = [8]
    tm = candidates[-1]
    for t in candidates:
        vmem = (2 * t * kc * in_bytes        # x tile, double-buffered
                + 2 * t * co * out_bytes     # out tile, double-buffered
                + t * co * 4                 # f32 accumulator temp
                + kc * co * in_bytes         # weights (single-buffered)
                + 2 * co * 4)                # bias
        if vmem <= budget_bytes:
            tm = t
            break
    # Rounding M up to a tile multiple is pure wasted HBM bandwidth on a
    # memory-bound kernel; shrink the tile until the waste is modest.
    while tm > 8 and (_round_up(m_rows, tm) - m_rows) > 0.15 * max(m_rows, 1):
        tm //= 2
    return max(tm, 8)


def conv_forward(x, weight, bias, *, stride=1, padding=0, dilation=1,
                 compute_dtype=None, _force_im2col=False):
    """Equivalent of Conv.forward.

    x      : (B, T, C_in)
    weight : (C_out, C_in, K)   -- PyTorch Conv1d layout
    bias   : (C_out,) or None
    compute_dtype : MXU operand dtype.  Pass jnp.bfloat16 on v6e/v7x for the
        half-width HBM/MXU path (accumulation stays f32; output stays x.dtype).
        Default None keeps x.dtype for exact parity with the PyTorch module.
    returns: (B, T_out, C_out) in x.dtype
    """
    B, T, C_in = x.shape
    C_out, C_in_w, K = weight.shape
    assert C_in_w == C_in

    T_out = (T + 2 * padding - dilation * (K - 1) - 1) // stride + 1
    out_dtype = x.dtype
    if B == 0 or T_out <= 0:
        # Degenerate conv (input shorter than the dilated kernel window).
        return jnp.zeros((B, max(T_out, 0), C_out), out_dtype)

    cdt = out_dtype if compute_dtype is None else compute_dtype
    in_bytes = jnp.dtype(cdt).itemsize
    out_bytes = jnp.dtype(out_dtype).itemsize
    budget, vmem_limit = _vmem_budget_and_limit()

    has_bias = bias is not None
    b_f32 = (bias.astype(jnp.float32) if has_bias
             else jnp.zeros((C_out,), jnp.float32)).reshape(1, C_out)

    # Cast operands to the compute dtype *before* any layout glue so HBM
    # intermediates (time pad / im2col) are already half-width on the bf16 path.
    x_c = x.astype(cdt)
    w_c = weight.astype(cdt)

    flops = 2 * B * T_out * K * C_in * C_out

    # ---------------- preferred path: in-kernel im2col (stride == 1) ----------
    T_xp = T + 2 * padding
    direct_vmem = (2 * T_xp * C_in * in_bytes          # x block (double-buffered)
                   + 2 * T_out * C_out * out_bytes     # out block (double-buffered)
                   + 2 * K * C_in * C_out * in_bytes   # weights (worst case 2 bufs)
                   + T_out * C_out * 4                 # f32 accumulator
                   + T_out * C_in * in_bytes           # shifted tap slice temp
                   + 2 * C_out * 4)
    use_direct = (not _force_im2col) and stride == 1 and direct_vmem <= budget

    if use_direct:
        x_p = (jnp.pad(x_c, ((0, 0), (padding, padding), (0, 0)))
               if padding > 0 else x_c)
        # TODO(synk): the time pad above is one extra HBM pass over x; fold it into
        # the kernel with per-tap edge masking if it ever shows up in profiles.
        w_p = jnp.transpose(w_c, (2, 1, 0))            # (K, C_in, C_out)

        cost = pl.CostEstimate(
            flops=flops, transcendentals=0,
            bytes_accessed=(B * T_xp * C_in * in_bytes
                            + K * C_in * C_out * in_bytes
                            + B * T_out * C_out * out_bytes))

        kernel = functools.partial(_conv_direct_kernel, K=K, dilation=dilation,
                                   T_out=T_out, has_bias=has_bias)

        def build(single_buffer):
            return pl.pallas_call(
                kernel,
                out_shape=jax.ShapeDtypeStruct((B, T_out, C_out), out_dtype),
                grid_spec=pltpu.PrefetchScalarGridSpec(
                    num_scalar_prefetch=0,
                    grid=(B,),
                    in_specs=[
                        pl.BlockSpec((1, T_xp, C_in), lambda b: (b, 0, 0)),
                        _const_block_spec((K, C_in, C_out), lambda b: (0, 0, 0),
                                          single_buffer),
                        _const_block_spec((1, C_out), lambda b: (0, 0),
                                          single_buffer),
                    ],
                    out_specs=pl.BlockSpec((1, T_out, C_out),
                                           lambda b: (b, 0, 0)),
                ),
                compiler_params=pltpu.CompilerParams(
                    dimension_semantics=("parallel",),
                    vmem_limit_bytes=vmem_limit,
                ),
                cost_estimate=cost,
            )

        # TODO(synk): for B == 1 with very long T, add a second (T_out-tile) grid
        # axis so DMA and compute overlap within the single batch element.
        return _call_with_buffering_fallback(build, x_p, w_p, b_f32)

    # -------- fallback path: XLA im2col + folded matmul over M = B*T_out rows --
    M = B * T_out
    Kc = K * C_in
    x_pad = (jnp.pad(x_c, ((0, 0), (padding, padding), (0, 0)))
             if padding > 0 else x_c)
    cols = []
    for j in range(K):
        start = j * dilation
        sl = jax.lax.slice_in_dim(
            x_pad, start, start + (T_out - 1) * stride + 1, axis=1)
        if stride > 1:
            sl = sl[:, ::stride, :]                    # (B, T_out, C_in)
        cols.append(sl)
    x_unf = cols[0] if K == 1 else jnp.concatenate(cols, axis=-1)
    x_unf = x_unf.reshape(M, Kc)                       # (M, K*C_in)
    # weight[c_out, c_in, k] pairs with column k*C_in + c_in
    w_fold = jnp.transpose(w_c, (2, 1, 0)).reshape(Kc, C_out)

    tm = _pick_tile_m(M, Kc, C_out, in_bytes, out_bytes, budget)
    M_pad = _round_up(M, tm)
    x_p = jnp.pad(x_unf, ((0, M_pad - M), (0, 0))) if M_pad != M else x_unf
    # No lane padding of Kc / C_out: sub-128 last dims are legal (they equal the
    # full array dims) and the MXU pads in-register instead of us paying HBM bytes.
    # TODO(synk): if Kc * C_out ever outgrows VMEM, add a contraction grid axis.

    cost = pl.CostEstimate(
        flops=flops, transcendentals=0,
        bytes_accessed=(M_pad * Kc * in_bytes + Kc * C_out * in_bytes
                        + M_pad * C_out * out_bytes))

    kernel = functools.partial(_conv_im2col_kernel, has_bias=has_bias)

    def build(single_buffer):
        return pl.pallas_call(
            kernel,
            out_shape=jax.ShapeDtypeStruct((M_pad, C_out), out_dtype),
            grid_spec=pltpu.PrefetchScalarGridSpec(
                num_scalar_prefetch=0,
                grid=(M_pad // tm,),
                in_specs=[
                    pl.BlockSpec((tm, Kc), lambda m: (m, 0)),
                    _const_block_spec((Kc, C_out), lambda m: (0, 0), single_buffer),
                    _const_block_spec((1, C_out), lambda m: (0, 0), single_buffer),
                ],
                out_specs=pl.BlockSpec((tm, C_out), lambda m: (m, 0)),
            ),
            compiler_params=pltpu.CompilerParams(
                dimension_semantics=("parallel",),
                vmem_limit_bytes=vmem_limit,
            ),
            cost_estimate=cost,
        )

    out = _call_with_buffering_fallback(build, x_p, w_fold, b_f32)
    return out[:M].reshape(B, T_out, C_out)


if __name__ == "__main__":
    def run_case(B, T, C_in, C_out, K, stride, padding, dilation, key, *,
                 use_bias=True, compute_dtype=None, force_im2col=False,
                 atol=1e-4, rtol=1e-4):
        kx, kw, kb = jax.random.split(key, 3)
        x = jax.random.normal(kx, (B, T, C_in), jnp.float32)
        bound = 1.0 / (C_in * K) ** 0.5
        weight = jax.random.uniform(kw, (C_out, C_in, K), jnp.float32,
                                    -bound, bound)
        bias = (jax.random.uniform(kb, (C_out,), jnp.float32, -bound, bound)
                if use_bias else None)

        y = conv_forward(x, weight, bias, stride=stride, padding=padding,
                         dilation=dilation, compute_dtype=compute_dtype,
                         _force_im2col=force_im2col)
        y = jax.block_until_ready(y)

        # pure-JAX reference: Conv.forward == transpose -> Conv1d -> transpose
        x_ncl = jnp.transpose(x, (0, 2, 1))
        y_ref = jax.lax.conv_general_dilated(
            x_ncl, weight, window_strides=(stride,),
            padding=[(padding, padding)], rhs_dilation=(dilation,),
            dimension_numbers=("NCH", "OIH", "NCH"))
        if use_bias:
            y_ref = y_ref + bias[None, :, None]
        y_ref = jnp.transpose(y_ref, (0, 2, 1))

        assert y.shape == y_ref.shape, (y.shape, y_ref.shape)
        err = float(jnp.max(jnp.abs(y - y_ref))) if y.size else 0.0
        assert jnp.allclose(y, y_ref, atol=atol, rtol=rtol), err

    key = jax.random.PRNGKey(0)
    ks = jax.random.split(key, 6)

    # module defaults: kernel_size=1, stride=1, padding=0, dilation=1, bias=True
    run_case(2, 16, 8, 16, 1, 1, 0, 1, ks[0])
    # K>1 "same" conv (direct in-kernel im2col path)
    run_case(2, 16, 8, 16, 3, 1, 1, 1, ks[1])
    # bias=False path
    run_case(2, 16, 8, 16, 1, 1, 0, 1, ks[2], use_bias=False)
    # dilated conv on the bf16 MXU operand path (f32 accumulation), direct path
    run_case(2, 16, 8, 16, 5, 1, 4, 2, ks[3], compute_dtype=jnp.bfloat16,
             atol=5e-2, rtol=5e-2)
    # strided/dilated conv -> im2col fallback path, bf16 operands
    run_case(2, 16, 8, 16, 3, 2, 2, 2, ks[4], compute_dtype=jnp.bfloat16,
             atol=5e-2, rtol=5e-2)
    # stride==1 but forced onto the im2col fallback (coverage of both paths)
    run_case(2, 16, 8, 16, 3, 1, 1, 1, ks[5], force_im2col=True)

    print("KERNEL_OK")
</pallas_src>

<mosaic_0001>
module attributes {stable_mosaic.version = 11 : i64} {
  func.func @_conv_direct_kernel(%arg0: i32, %arg1: memref<1x16x8xf32, #tpu.memory_space<vmem>>, %arg2: memref<1x8x16xf32, #tpu.memory_space<vmem>>, %arg3: memref<1x16xf32, #tpu.memory_space<vmem>>, %arg4: memref<1x16x16xf32, #tpu.memory_space<vmem>>) attributes {dimension_semantics = [#tpu.dimension_semantics<parallel>], iteration_bounds = array<i64: 2>, scalar_prefetch = 0 : i64, scratch_operands = 0 : i64, tpu.core_type = #tpu.core_type<tc>, window_params = [{transform_indices = @transform_0, window_bounds = array<i64: 1, 16, 8>}, {pipeline_mode = #tpu.pipeline_mode<synchronous>, transform_indices = @transform_1, window_bounds = array<i64: 1, 8, 16>}, {pipeline_mode = #tpu.pipeline_mode<synchronous>, transform_indices = @transform_2, window_bounds = array<i64: 1, 16>}, {transform_indices = @transform_3, window_bounds = array<i64: 1, 16, 16>}]} {
    %c0 = arith.constant 0 : index
    %c0_0 = arith.constant 0 : index
    %c0_1 = arith.constant 0 : index
    %0 = vector.load %arg1[%c0, %c0_0, %c0_1] : memref<1x16x8xf32, #tpu.memory_space<vmem>>, vector<1x16x8xf32>
    %1 = vector.shape_cast %0 : vector<1x16x8xf32> to vector<16x8xf32>
    %c0_2 = arith.constant 0 : index
    %c0_3 = arith.constant 0 : index
    %c0_4 = arith.constant 0 : index
    %2 = vector.load %arg2[%c0_2, %c0_3, %c0_4] : memref<1x8x16xf32, #tpu.memory_space<vmem>>, vector<1x8x16xf32>
    %3 = vector.shape_cast %2 : vector<1x8x16xf32> to vector<8x16xf32>
    %cst = arith.constant dense<0.000000e+00> : vector<16x16xf32>
    %4 = tpu.matmul %1, %3, %cst {dimension_numbers = #tpu.dot_dimension_numbers<[1], [0], [0], [1], [0, 0, 1, 1], [], []>} : vector<16x8xf32>, vector<8x16xf32>, vector<16x16xf32> -> vector<16x16xf32>
    %c0_5 = arith.constant 0 : index
    %c0_6 = arith.constant 0 : index
    %5 = vector.load %arg3[%c0_5, %c0_6] : memref<1x16xf32, #tpu.memory_space<vmem>>, vector<1x16xf32>
    %6 = vector.broadcast %5 : vector<1x16xf32> to vector<16x16xf32>
    %7 = arith.addf %4, %6 : vector<16x16xf32>
    %c0_7 = arith.constant 0 : index
    %c0_8 = arith.constant 0 : index
    %c0_9 = arith.constant 0 : index
    %8 = vector.load %arg4[%c0_7, %c0_8, %c0_9] : memref<1x16x16xf32, #tpu.memory_space<vmem>>, vector<1x16x16xf32>
    %9 = vector.shape_cast %8 : vector<1x16x16xf32> to vector<16x16xf32>
    %10 = vector.shape_cast %7 : vector<16x16xf32> to vector<1x16x16xf32>
    tpu.vector_store %arg4[%c0_7, %c0_8, %c0_9], %10 {strides = array<i32>} : memref<1x16x16xf32, #tpu.memory_space<vmem>>, vector<1x16x16xf32>,
    return
  }
  func.func @transform_0(%arg0: i32) -> (i32, i32, i32) {
    %c0_i32 = arith.constant 0 : i32
    %c0_i32_0 = arith.constant 0 : i32
    %c0_i32_1 = arith.constant 0 : i32
    return %arg0, %c0_i32, %c0_i32_0 : i32, i32, i32
  }
  func.func @transform_1(%arg0: i32) -> (i32, i32, i32) {
    %c0_i32 = arith.constant 0 : i32
    %c0_i32_0 = arith.constant 0 : i32
    %c0_i32_1 = arith.constant 0 : i32
    %c0_i32_2 = arith.constant 0 : i32
    return %c0_i32, %c0_i32_0, %c0_i32_1 : i32, i32, i32
  }
  func.func @transform_2(%arg0: i32) -> (i32, i32) {
    %c0_i32 = arith.constant 0 : i32
    %c0_i32_0 = arith.constant 0 : i32
    %c0_i32_1 = arith.constant 0 : i32
    return %c0_i32, %c0_i32_0 : i32, i32
  }
  func.func @transform_3(%arg0: i32) -> (i32, i32, i32) {
    %c0_i32 = arith.constant 0 : i32
    %c0_i32_0 = arith.constant 0 : i32
    %c0_i32_1 = arith.constant 0 : i32
    return %arg0, %c0_i32, %c0_i32_0 : i32, i32, i32
  }
}

module attributes {stable_mosaic.version = 11 : i64} {
  func.func @_conv_direct_kernel(%arg0: i32, %arg1: memref<1x16x8xf32, #tpu.memory_space<vmem>>, %arg2: memref<1x8x16xf32, #tpu.memory_space<vmem>>, %arg3: memref<1x16xf32, #tpu.memory_space<vmem>>, %arg4: memref<1x16x16xf32, #tpu.memory_space<vmem>>) attributes {dimension_semantics = [#tpu.dimension_semantics<parallel>], iteration_bounds = array<i64: 2>, scalar_prefetch = 0 : i64, scratch_operands = 0 : i64, tpu.core_type = #tpu.core_type<tc>, window_params = [{transform_indices = @transform_0, window_bounds = array<i64: 1, 16, 8>}, {pipeline_mode = #tpu.pipeline_mode<synchronous>, transform_indices = @transform_1, window_bounds = array<i64: 1, 8, 16>}, {pipeline_mode = #tpu.pipeline_mode<synchronous>, transform_indices = @transform_2, window_bounds = array<i64: 1, 16>}, {transform_indices = @transform_3, window_bounds = array<i64: 1, 16, 16>}]} {
    %c0 = arith.constant 0 : index
    %c0_0 = arith.constant 0 : index
    %c0_1 = arith.constant 0 : index
    %0 = vector.load %arg1[%c0, %c0_0, %c0_1] : memref<1x16x8xf32, #tpu.memory_space<vmem>>, vector<1x16x8xf32>
    %1 = vector.shape_cast %0 : vector<1x16x8xf32> to vector<16x8xf32>
    %c0_2 = arith.constant 0 : index
    %c0_3 = arith.constant 0 : index
    %c0_4 = arith.constant 0 : index
    %2 = vector.load %arg2[%c0_2, %c0_3, %c0_4] : memref<1x8x16xf32, #tpu.memory_space<vmem>>, vector<1x8x16xf32>
    %3 = vector.shape_cast %2 : vector<1x8x16xf32> to vector<8x16xf32>
    %cst = arith.constant dense<0.000000e+00> : vector<16x16xf32>
    %4 = tpu.matmul %1, %3, %cst {dimension_numbers = #tpu.dot_dimension_numbers<[1], [0], [0], [1], [0, 0, 1, 1], [], []>} : vector<16x8xf32>, vector<8x16xf32>, vector<16x16xf32> -> vector<16x16xf32>
    %c0_5 = arith.constant 0 : index
    %c0_6 = arith.constant 0 : index
    %5 = vector.load %arg3[%c0_5, %c0_6] : memref<1x16xf32, #tpu.memory_space<vmem>>, vector<1x16xf32>
    %6 = vector.broadcast %5 : vector<1x16xf32> to vector<16x16xf32>
    %7 = arith.addf %4, %6 : vector<16x16xf32>
    %c0_7 = arith.constant 0 : index
    %c0_8 = arith.constant 0 : index
    %c0_9 = arith.constant 0 : index
    %8 = vector.load %arg4[%c0_7, %c0_8, %c0_9] : memref<1x16x16xf32, #tpu.memory_space<vmem>>, vector<1x16x16xf32>
    %9 = vector.shape_cast %8 : vector<1x16x16xf32> to vector<16x16xf32>
    %10 = vector.shape_cast %7 : vector<16x16xf32> to vector<1x16x16xf32>
    tpu.vector_store %arg4[%c0_7, %c0_8, %c0_9], %10 {strides = array<i32>} : memref<1x16x16xf32, #tpu.memory_space<vmem>>, vector<1x16x16xf32>,
    return
  }
  func.func @transform_0(%arg0: i32) -> (i32, i32, i32) {
    %c0_i32 = arith.constant 0 : i32
    %c0_i32_0 = arith.constant 0 : i32
    %c0_i32_1 = arith.constant 0 : i32
    return %arg0, %c0_i32, %c0_i32_0 : i32, i32, i32
  }
  func.func @transform_1(%arg0: i32) -> (i32, i32, i32) {
    %c0_i32 = arith.constant 0 : i32
    %c0_i32_0 = arith.constant 0 : i32
    %c0_i32_1 = arith.constant 0 : i32
    %c0_i32_2 = arith.constant 0 : i32
    return %c0_i32, %c0_i32_0, %c0_i32_1 : i32, i32, i32
  }
  func.func @transform_2(%arg0: i32) -> (i32, i32) {
    %c0_i32 = arith.constant 0 : i32
    %c0_i32_0 = arith.constant 0 : i32
    %c0_i32_1 = arith.constant 0 : i32
    return %c0_i32, %c0_i32_0 : i32, i32
  }
  func.func @transform_3(%arg0: i32) -> (i32, i32, i32) {
    %c0_i32 = arith.constant 0 : i32
    %c0_i32_0 = arith.constant 0 : i32
    %c0_i32_1 = arith.constant 0 : i32
    return %arg0, %c0_i32, %c0_i32_0 : i32, i32, i32
  }
}

</mosaic_0001>

<llo_original>
// kernel: tpu_custom_call.1
$region0: #{tpu_custom_call.1}
  #allocation0 [shape = 'u32[]', space=smem, size = 0x4, offset = 0x4, fixed_abs, tag = 'smem constant byte address 0x4 - core index']
  #allocation1 [shape = 'u32[144,128]{1,0:T(1,128)}', space=vmem, size = 0x12000, scoped, tag = 'internal scratch']
  %s0 = inlined_call_operand.vmem [shape: f32[2,16,8], index: 0, kind: input, shape index: {}]
  %s1 = inlined_call_operand.vmem [shape: f32[1,8,16], index: 1, kind: input, shape index: {}]
  %s2 = inlined_call_operand.vmem [shape: f32[1,16], index: 2, kind: input, shape index: {}]
  %s3 = inlined_call_operand.hbm [shape: f32[2,16,16], index: 3, kind: output, shape index: {}]
  %s4 = sld [smem:[#allocation0]]
  $region45: #{tpu_custom_call.1} parent=0
    _
  %s6 = ssub.s32 1, %s4
  %s7 = scalar_select 0, %s6, %s4
  $region1: #{tpu_custom_call.1} parent=0
    #allocation2 [shape = 'u8[16384]{0}', space=vmem, size = 0x4000, scoped, tag = 'output window, operand 0']
    #allocation3 [shape = 's32[2]{0}', space=sflag, size = 0x8, scoped, tag = 'scoped memory for tpu_custom_call.1']
    %8 = vsyncpa [#allocation3], 0
    %s9 = scalar_lea.sflag [#allocation3], 1
    %10 = vsyncpa %s9, 0
    loop: start=0, step=1, limit=4
    $region2: #{tpu_custom_call.1} parent=1 // loop_pre_header
      _
    $region3: #{tpu_custom_call.1} parent=1 // loop_header
      %s12 = sphi 0, %s16
      %p13 = scmp.ge.s32.totalorder %s12, 4
      %s22 = sphi 0, %s24
      %s25 = sphi 0, %s22
      %s26 = sphi 0, %s25
      %s42 = sphi 0, %s26
      %s46 = sphi 0, %s46
      %s48 = sphi 0, %s46
      %s49 = sphi 0, %s48
      %s63 = sphi 0, %s49
      %s67 = sphi 0, %s67
      %s69 = sphi 0, %s67
      %s70 = sphi 0, %s69
      %s84 = sphi 0, %s70
      %s90 = sphi 0, %s92
      %s93 = sphi 0, %s90
      %s94 = sphi 0, %s93
      %s110 = sphi 0, %s94
    $region4: #{tpu_custom_call.1} parent=1 // loop_header_branch
      %15 = sbr.rel (%p13) target = $region8
    $region5: #{tpu_custom_call.1} parent=1 // loop_body
      %s17 = ssub.s32 %s12, 1
      %s18 = ssub.s32 %s12, 2
      %s19 = sadd.s32 %s12, 1
      %s20 = ssub.s32 %s12, %s19
      %p21 = scmp.eq.s32.totalorder %s20, 0
      %s23 = sadd.s32 %s22, 1
      %s24 = scalar_select %p21, %s22, %s23
      %p27 = pneg %p21
      %p28 = scmp.eq.s32.totalorder %s12, 1
      %p29 = por %p27, %p28
      %p30 = scmp.ne.s32.totalorder %s22, %s25
      %p31 = scmp.eq.s32.totalorder %s12, 0
      %p32 = por %p30, %p31
      %p33 = scmp.ne.s32.totalorder %s22, %s25
      %p34 = scmp.eq.s32.totalorder %s17, 1
      %p35 = por %p33, %p34
      %p36 = scmp.ne.s32.totalorder %s25, %s26
      %p37 = scmp.eq.s32.totalorder %s17, 0
      %p38 = por %p36, %p37
      %p39 = scmp.ne.s32.totalorder %s25, %s26
      %p40 = scmp.eq.s32.totalorder %s18, 1
      %p41 = por %p39, %p40
      %p43 = scmp.ne.s32.totalorder %s26, %s42
      %p44 = scmp.eq.s32.totalorder %s18, 0
      %p45 = por %p43, %p44
      %s47 = sadd.s32 %s46, 1
      %p50 = scmp.eq.s32.totalorder %s12, 1
      %p51 = scmp.ne.s32.totalorder %s46, %s48
      %p52 = scmp.eq.s32.totalorder %s12, 0
      %p53 = por %p51, %p52
      %p54 = scmp.ne.s32.totalorder %s46, %s48
      %p55 = scmp.eq.s32.totalorder %s17, 1
      %p56 = por %p54, %p55
      %p57 = scmp.ne.s32.totalorder %s48, %s49
      %p58 = scmp.eq.s32.totalorder %s17, 0
      %p59 = por %p57, %p58
      %p60 = scmp.ne.s32.totalorder %s48, %s49
      %p61 = scmp.eq.s32.totalorder %s18, 1
      %p62 = por %p60, %p61
      %p64 = scmp.ne.s32.totalorder %s49, %s63
      %p65 = scmp.eq.s32.totalorder %s18, 0
      %p66 = por %p64, %p65
      %s68 = sadd.s32 %s67, 1
      %p71 = scmp.eq.s32.totalorder %s12, 1
      %p72 = scmp.ne.s32.totalorder %s67, %s69
      %p73 = scmp.eq.s32.totalorder %s12, 0
      %p74 = por %p72, %p73
      %p75 = scmp.ne.s32.totalorder %s67, %s69
      %p76 = scmp.eq.s32.totalorder %s17, 1
      %p77 = por %p75, %p76
      %p78 = scmp.ne.s32.totalorder %s69, %s70
      %p79 = scmp.eq.s32.totalorder %s17, 0
      %p80 = por %p78, %p79
      %p81 = scmp.ne.s32.totalorder %s69, %s70
      %p82 = scmp.eq.s32.totalorder %s18, 1
      %p83 = por %p81, %p82
      %p85 = scmp.ne.s32.totalorder %s70, %s84
      %p86 = scmp.eq.s32.totalorder %s18, 0
      %p87 = por %p85, %p86
      %s88 = ssub.s32 %s12, %s19
      %p89 = scmp.eq.s32.totalorder %s88, 0
      %s91 = sadd.s32 %s90, 1
      %s92 = scalar_select %p89, %s90, %s91
      %p95 = pneg %p89
      %p96 = scmp.eq.s32.totalorder %s12, 1
      %p97 = por %p95, %p96
      %p98 = scmp.ne.s32.totalorder %s90, %s93
      %p99 = scmp.eq.s32.totalorder %s12, 0
      %p100 = por %p98, %p99
      %p101 = scmp.ne.s32.totalorder %s90, %s93
      %p102 = scmp.eq.s32.totalorder %s17, 1
      %p103 = por %p101, %p102
      %p104 = scmp.ne.s32.totalorder %s93, %s94
      %p105 = scmp.eq.s32.totalorder %s17, 0
      %p106 = por %p104, %p105
      %p107 = scmp.ne.s32.totalorder %s93, %s94
      %p108 = scmp.eq.s32.totalorder %s18, 1
      %p109 = por %p107, %p108
      %p111 = scmp.ne.s32.totalorder %s94, %s110
      %p112 = scmp.eq.s32.totalorder %s18, 0
      %p113 = por %p111, %p112
      %p114 = scmp.le.s32.totalorder 1, %s12
      %p115 = scmp.lt.s32.totalorder %s12, 3
      %p116 = pnand %p114, %p115
      %p117 = pneg %p116
      // Predicated region
      $region9: #{tpu_custom_call.1} parent=5 // pred_check
        _
      $region10: #{tpu_custom_call.1} parent=5 // pred_check_branch
        %119 = sbr.rel (%p116) target = $region12
      $region11: #{tpu_custom_call.1} parent=5 // pred_region
        %s120 = ssub.s32 %s12, 1
        // Predicated region
        $region13: #{tpu_custom_call.1} parent=11 // pred_check
          %p121 = pneg %p59
        $region14: #{tpu_custom_call.1} parent=11 // pred_check_branch
          %123 = sbr.rel (%p121) target = $region16
        $region15: #{tpu_custom_call.1} parent=11 // pred_region
          _
        $region16: #{tpu_custom_call.1} parent=11 // pred_fallthru
          _
        // Predicated region
        $region17: #{tpu_custom_call.1} parent=11 // pred_check
          %p124 = pneg %p80
        $region18: #{tpu_custom_call.1} parent=11 // pred_check_branch
          %126 = sbr.rel (%p124) target = $region20
        $region19: #{tpu_custom_call.1} parent=11 // pred_region
          _
        $region20: #{tpu_custom_call.1} parent=11 // pred_fallthru
          _
      $region12: #{tpu_custom_call.1} parent=5 // pred_fallthru
        _
      %p127 = scmp.lt.s32.totalorder %s12, 2
      // Predicated region
      $region21: #{tpu_custom_call.1} parent=5 // pred_check
        %p128 = pneg %p127
      $region22: #{tpu_custom_call.1} parent=5 // pred_check_branch
        %130 = sbr.rel (%p128) target = $region24
      $region23: #{tpu_custom_call.1} parent=5 // pred_region
        // Predicated region
        $region25: #{tpu_custom_call.1} parent=23 // pred_check
          %p131 = pneg %p32
        $region26: #{tpu_custom_call.1} parent=23 // pred_check_branch
          %133 = sbr.rel (%p131) target = $region28
        $region27: #{tpu_custom_call.1} parent=23 // pred_region
          %p134 = scmp.lt.s32.totalorder %s12, 1
          %s135 = scalar_select %p134, %s12, 1
          %s136 = smul.addr %s135, 2
          %s137 = smul.addr %s136, 8
          %s138 = scalar_lea.vmem %s0, %s137
        $region28: #{tpu_custom_call.1} parent=23 // pred_fallthru
          _
      $region24: #{tpu_custom_call.1} parent=5 // pred_fallthru
        _
      %p139 = scmp.le.s32.totalorder 1, %s12
      %p140 = scmp.lt.s32.totalorder %s12, 3
      %p141 = pnand %p139, %p140
      %p142 = pneg %p141
      // Predicated region
      $region29: #{tpu_custom_call.1} parent=5 // pred_check
        _
      $region30: #{tpu_custom_call.1} parent=5 // pred_check_branch
        %144 = sbr.rel (%p141) target = $region32
      $region31: #{tpu_custom_call.1} parent=5 // pred_region
        %s145 = ssub.s32 %s12, 1
        %p146 = scmp.lt.s32.totalorder %s17, 1
        %s147 = scalar_select %p146, %s17, 1
        %s148 = smul.addr %s147, 2
        %s149 = smul.addr %s148, 8
        %s150 = scalar_lea.vmem %s0, %s149
        %p151 = pneg %p38
        %p152 = pneg %p35
        %p153 = pneg %p59
        %p154 = pneg %p56
        %p155 = pneg %p80
        %p156 = pneg %p77
        %p157 = pneg %p106
        %p158 = pneg %p103
        %s159 = sand.u32 %s93, 1
        %s160 = scalar_lea.sflag [#allocation3], %s159
        %s161 = sand.u32 %s93, 1
        %s162 = smul.addr %s161, 16
        %s163 = scalar_lea.vmem [#allocation2], %s162
        %p164 = scmp.lt.s32.totalorder %s17, 1
        %s165 = scalar_select %p164, %s17, 1
        %s166 = smul.addr %s165, 2
        %s167 = smul.addr %s166, 8
        %s168 = scalar_lea.vmem %s0, %s167
        %v169 = vld [vmem:[%s168] sm:$0xff]
        %v170 = vld [vmem:[%s168 + $0x8] sm:$0xff]
        %v171 = vld [vmem:[%s1] sm:$0xff]
        %v172 = vld [vmem:[%s2] sm:$0x1]
        %v174 = vlaneseq
        %v175 = vshrl.u32 %v174, 7
        %v176 = vsub.s32 0, %v175
        %v177 = vrot.slane %v172, %v176
        %vm179 = vcmask 64512
        %v181 = vsel %vm179, %v169, 0
        %v184 = vsel %vm179, %v170, 0
        %186 = vmatprep.subr.mxu0 0.0
        %187 = vmatpush1.msra.mxu0 0.0
        %188 = vmatprep.subr.mxu0 0.0
        %189 = vmatpush1.msra.mxu0 0.0
        %190 = vmatprep.subr.mxu0 0.0
        %191 = vmatpush1.msra.mxu0 0.0
        %192 = vmatprep.subr.mxu0 0.0
        %193 = vmatpush1.msra.mxu0 0.0
        %194 = vmatprep.subr.mxu0 0.0
        %195 = vmatpush1.msra.mxu0 0.0
        %196 = vmatprep.subr.mxu0 0.0
        %197 = vmatpush1.msra.mxu0 0.0
        %198 = vmatprep.subr.mxu0 0.0
        %199 = vmatpush1.msra.mxu0 0.0
        %200 = vmatprep.subr.mxu0 0.0
        %201 = vmatpush1.msra.mxu0 0.0
        %202 = vmatprep.subr.mxu0 0.0
        %203 = vmatpush1.msra.mxu0 0.0
        %204 = vmatprep.subr.mxu0 0.0
        %205 = vmatpush1.msra.mxu0 0.0
        %206 = vmatprep.subr.mxu0 0.0
        %207 = vmatpush1.msra.mxu0 0.0
        %208 = vmatprep.subr.mxu0 0.0
        %209 = vmatpush1.msra.mxu0 0.0
        %210 = vmatprep.subr.mxu0 0.0
        %211 = vmatpush1.msra.mxu0 0.0
        %212 = vmatprep.subr.mxu0 0.0
        %213 = vmatpush1.msra.mxu0 0.0
        %214 = vmatprep.subr.mxu0 0.0
        %215 = vmatpush1.msra.mxu0 0.0
        %216 = vmatprep.subr.mxu0 0.0
        %217 = vmatpush1.msra.mxu0 %v171
        %218 = vmatprep.subr.mxu0 0.0
        %219 = vmatpush2.msra.mxu0 0.0
        %220 = vmatprep.subr.mxu0 0.0
        %221 = vmatpush2.msra.mxu0 0.0
        %222 = vmatprep.subr.mxu0 0.0
        %223 = vmatpush2.msra.mxu0 0.0
        %224 = vmatprep.subr.mxu0 0.0
        %225 = vmatpush2.msra.mxu0 0.0
        %226 = vmatprep.subr.mxu0 0.0
        %227 = vmatpush2.msra.mxu0 0.0
        %228 = vmatprep.subr.mxu0 0.0
        %229 = vmatpush2.msra.mxu0 0.0
        %230 = vmatprep.subr.mxu0 0.0
        %231 = vmatpush2.msra.mxu0 0.0
        %232 = vmatprep.subr.mxu0 0.0
        %233 = vmatpush2.msra.mxu0 0.0
        %234 = vmatprep.subr.mxu0 0.0
        %235 = vmatpush2.msra.mxu0 0.0
        %236 = vmatprep.subr.mxu0 0.0
        %237 = vmatpush2.msra.mxu0 0.0
        %238 = vmatprep.subr.mxu0 0.0
        %239 = vmatpush2.msra.mxu0 0.0
        %240 = vmatprep.subr.mxu0 0.0
        %241 = vmatpush2.msra.mxu0 0.0
        %242 = vmatprep.subr.mxu0 0.0
        %243 = vmatpush2.msra.mxu0 0.0
        %244 = vmatprep.subr.mxu0 0.0
        %245 = vmatpush2.msra.mxu0 0.0
        %246 = vmatprep.subr.mxu0 0.0
        %247 = vmatpush2.msra.mxu0 0.0
        %248 = vmatprep.subr.mxu0 0.0
        %249 = vmatpush2.msra.mxu0 0.0
        %250 = vmatprep.mubr.f32.mxu0 0.0
        %251 = vmatmul.mubr.f32.gmra.mxu0 %v181
        %v252 = vpop.f32.mrf.mxu0
        %v253 = vadd.f32 %v177, %v252
        %v254 = vpop.f32.mrf.mxu0
        %255 = vmatprep.mubr.f32.mxu0 0.0
        %256 = vmatmul.mubr.f32.gmra.mxu0 %v184
        %v257 = vpop.f32.mrf.mxu0
        %v258 = vadd.f32 %v177, %v257
        %v259 = vpop.f32.mrf.mxu0
        %260 = vdwg.mxu0
        %vm261 = vcmask 130048
        %262 = vst.msk [vmem:[%s163] sm:$0xff] %vm261, %v253
        %263 = vst.msk [vmem:[%s163 + $0x8] sm:$0xff] %vm261, %v258
        %s264 = sand.u32 %s93, 1
        %s265 = scalar_lea.sflag [#allocation3], %s264
        %s266 = sand.u32 %s93, 1
        %s267 = smul.addr %s266, 16
        %s268 = scalar_lea.vmem [#allocation2], %s267
        // Predicated region
        $region33: #{tpu_custom_call.1} parent=31 // pred_check
          %p269 = pneg %p103
        $region34: #{tpu_custom_call.1} parent=31 // pred_check_branch
          %271 = sbr.rel (%p269) target = $region36
        $region35: #{tpu_custom_call.1} parent=31 // pred_region
          %s273 = ssub.s32 256, 256
          %274 = vsyncadd %s265, %s273
          %s275 = smul.addr %s17, 2
          %s276 = smul.addr %s275, 128
          %s277 = scalar_lea.hbm %s3, %s276
          %s278 = sshll.u32 %s268, 4
          %s279 = int_to_ptr.vmem [resolvable:$true] %s278
          %284 = dma.vmem_to_hbm [thread:$0]  %s279, 256, %s277, %s265, 128, 128, 8
        $region36: #{tpu_custom_call.1} parent=31 // pred_fallthru
          _
      $region32: #{tpu_custom_call.1} parent=5 // pred_fallthru
        _
      %p285 = scmp.le.s32.totalorder 2, %s12
      // Predicated region
      $region37: #{tpu_custom_call.1} parent=5 // pred_check
        %p286 = pneg %p285
      $region38: #{tpu_custom_call.1} parent=5 // pred_check_branch
        %288 = sbr.rel (%p286) target = $region40
      $region39: #{tpu_custom_call.1} parent=5 // pred_region
        %s289 = ssub.s32 %s12, 2
        // Predicated region
        $region41: #{tpu_custom_call.1} parent=39 // pred_check
          %p290 = pneg %p109
        $region42: #{tpu_custom_call.1} parent=39 // pred_check_branch
          %292 = sbr.rel (%p290) target = $region44
        $region43: #{tpu_custom_call.1} parent=39 // pred_region
          %s293 = sand.u32 %s94, 1
          %s294 = scalar_lea.sflag [#allocation3], %s293
          %s295 = sand.u32 %s94, 1
          %s296 = smul.addr %s295, 16
          %s297 = scalar_lea.vmem [#allocation2], %s296
          %298 = dma.done %s294, 256
        $region44: #{tpu_custom_call.1} parent=39 // pred_fallthru
          _
      $region40: #{tpu_custom_call.1} parent=5 // pred_fallthru
        _
    $region6: #{tpu_custom_call.1} parent=1 // loop_footer
      %s16 = sadd.s32 1, %s12
    $region7: #{tpu_custom_call.1} parent=1 // loop_footer_branch
      %11 = sbr.rel target = $region3
    $region8: #{tpu_custom_call.1} parent=1 // loop_exit
      _
    %299 = vsyncpa [#allocation3], 1
    %s300 = scalar_lea.sflag [#allocation3], 1
    %301 = vsyncpa %s300, 1

// kernel: tpu_custom_call.1
$region0: #{tpu_custom_call.1}
  #allocation0 [shape = 'u32[]', space=smem, size = 0x4, offset = 0x4, fixed_abs, tag = 'smem constant byte address 0x4 - core index']
  #allocation1 [shape = 'u32[144,128]{1,0:T(1,128)}', space=vmem, size = 0x12000, scoped, tag = 'internal scratch']
  %s0 = inlined_call_operand.vmem [shape: f32[2,16,8], index: 0, kind: input, shape index: {}]
  %s1 = inlined_call_operand.vmem [shape: f32[1,8,16], index: 1, kind: input, shape index: {}]
  %s2 = inlined_call_operand.vmem [shape: f32[1,16], index: 2, kind: input, shape index: {}]
  %s3 = inlined_call_operand.hbm [shape: f32[2,16,16], index: 3, kind: output, shape index: {}]
  %s4 = sld [smem:[#allocation0]]
  $region45: #{tpu_custom_call.1} parent=0
    _
  %s6 = ssub.s32 1, %s4
  %s7 = scalar_select 0, %s6, %s4
  $region1: #{tpu_custom_call.1} parent=0
    #allocation2 [shape = 'u8[16384]{0}', space=vmem, size = 0x4000, scoped, tag = 'output window, operand 0']
    #allocation3 [shape = 's32[2]{0}', space=sflag, size = 0x8, scoped, tag = 'scoped memory for tpu_custom_call.1']
    %8 = vsyncpa [#allocation3], 0
    %s9 = scalar_lea.sflag [#allocation3], 1
    %10 = vsyncpa %s9, 0
    loop: start=0, step=1, limit=4
    $region2: #{tpu_custom_call.1} parent=1 // loop_pre_header
      _
    $region3: #{tpu_custom_call.1} parent=1 // loop_header
      %s12 = sphi 0, %s16
      %p13 = scmp.ge.s32.totalorder %s12, 4
      %s22 = sphi 0, %s24
      %s25 = sphi 0, %s22
      %s26 = sphi 0, %s25
      %s42 = sphi 0, %s26
      %s46 = sphi 0, %s46
      %s48 = sphi 0, %s46
      %s49 = sphi 0, %s48
      %s63 = sphi 0, %s49
      %s67 = sphi 0, %s67
      %s69 = sphi 0, %s67
      %s70 = sphi 0, %s69
      %s84 = sphi 0, %s70
      %s90 = sphi 0, %s92
      %s93 = sphi 0, %s90
      %s94 = sphi 0, %s93
      %s110 = sphi 0, %s94
    $region4: #{tpu_custom_call.1} parent=1 // loop_header_branch
      %15 = sbr.rel (%p13) target = $region8
    $region5: #{tpu_custom_call.1} parent=1 // loop_body
      %s17 = ssub.s32 %s12, 1
      %s18 = ssub.s32 %s12, 2
      %s19 = sadd.s32 %s12, 1
      %s20 = ssub.s32 %s12, %s19
      %p21 = scmp.eq.s32.totalorder %s20, 0
      %s23 = sadd.s32 %s22, 1
      %s24 = scalar_select %p21, %s22, %s23
      %p27 = pneg %p21
      %p28 = scmp.eq.s32.totalorder %s12, 1
      %p29 = por %p27, %p28
      %p30 = scmp.ne.s32.totalorder %s22, %s25
      %p31 = scmp.eq.s32.totalorder %s12, 0
      %p32 = por %p30, %p31
      %p33 = scmp.ne.s32.totalorder %s22, %s25
      %p34 = scmp.eq.s32.totalorder %s17, 1
      %p35 = por %p33, %p34
      %p36 = scmp.ne.s32.totalorder %s25, %s26
      %p37 = scmp.eq.s32.totalorder %s17, 0
      %p38 = por %p36, %p37
      %p39 = scmp.ne.s32.totalorder %s25, %s26
      %p40 = scmp.eq.s32.totalorder %s18, 1
      %p41 = por %p39, %p40
      %p43 = scmp.ne.s32.totalorder %s26, %s42
      %p44 = scmp.eq.s32.totalorder %s18, 0
      %p45 = por %p43, %p44
      %s47 = sadd.s32 %s46, 1
      %p50 = scmp.eq.s32.totalorder %s12, 1
      %p51 = scmp.ne.s32.totalorder %s46, %s48
      %p52 = scmp.eq.s32.totalorder %s12, 0
      %p53 = por %p51, %p52
      %p54 = scmp.ne.s32.totalorder %s46, %s48
      %p55 = scmp.eq.s32.totalorder %s17, 1
      %p56 = por %p54, %p55
      %p57 = scmp.ne.s32.totalorder %s48, %s49
      %p58 = scmp.eq.s32.totalorder %s17, 0
      %p59 = por %p57, %p58
      %p60 = scmp.ne.s32.totalorder %s48, %s49
      %p61 = scmp.eq.s32.totalorder %s18, 1
      %p62 = por %p60, %p61
      %p64 = scmp.ne.s32.totalorder %s49, %s63
      %p65 = scmp.eq.s32.totalorder %s18, 0
      %p66 = por %p64, %p65
      %s68 = sadd.s32 %s67, 1
      %p71 = scmp.eq.s32.totalorder %s12, 1
      %p72 = scmp.ne.s32.totalorder %s67, %s69
      %p73 = scmp.eq.s32.totalorder %s12, 0
      %p74 = por %p72, %p73
      %p75 = scmp.ne.s32.totalorder %s67, %s69
      %p76 = scmp.eq.s32.totalorder %s17, 1
      %p77 = por %p75, %p76
      %p78 = scmp.ne.s32.totalorder %s69, %s70
      %p79 = scmp.eq.s32.totalorder %s17, 0
      %p80 = por %p78, %p79
      %p81 = scmp.ne.s32.totalorder %s69, %s70
      %p82 = scmp.eq.s32.totalorder %s18, 1
      %p83 = por %p81, %p82
      %p85 = scmp.ne.s32.totalorder %s70, %s84
      %p86 = scmp.eq.s32.totalorder %s18, 0
      %p87 = por %p85, %p86
      %s88 = ssub.s32 %s12, %s19
      %p89 = scmp.eq.s32.totalorder %s88, 0
      %s91 = sadd.s32 %s90, 1
      %s92 = scalar_select %p89, %s90, %s91
      %p95 = pneg %p89
      %p96 = scmp.eq.s32.totalorder %s12, 1
      %p97 = por %p95, %p96
      %p98 = scmp.ne.s32.totalorder %s90, %s93
      %p99 = scmp.eq.s32.totalorder %s12, 0
      %p100 = por %p98, %p99
      %p101 = scmp.ne.s32.totalorder %s90, %s93
      %p102 = scmp.eq.s32.totalorder %s17, 1
      %p103 = por %p101, %p102
      %p104 = scmp.ne.s32.totalorder %s93, %s94
      %p105 = scmp.eq.s32.totalorder %s17, 0
      %p106 = por %p104, %p105
      %p107 = scmp.ne.s32.totalorder %s93, %s94
      %p108 = scmp.eq.s32.totalorder %s18, 1
      %p109 = por %p107, %p108
      %p111 = scmp.ne.s32.totalorder %s94, %s110
      %p112 = scmp.eq.s32.totalorder %s18, 0
      %p113 = por %p111, %p112
      %p114 = scmp.le.s32.totalorder 1, %s12
      %p115 = scmp.lt.s32.totalorder %s12, 3
      %p116 = pnand %p114, %p115
      %p117 = pneg %p116
      // Predicated region
      $region9: #{tpu_custom_call.1} parent=5 // pred_check
        _
      $region10: #{tpu_custom_call.1} parent=5 // pred_check_branch
        %119 = sbr.rel (%p116) target = $region12
      $region11: #{tpu_custom_call.1} parent=5 // pred_region
        %s120 = ssub.s32 %s12, 1
        // Predicated region
        $region13: #{tpu_custom_call.1} parent=11 // pred_check
          %p121 = pneg %p59
        $region14: #{tpu_custom_call.1} parent=11 // pred_check_branch
          %123 = sbr.rel (%p121) target = $region16
        $region15: #{tpu_custom_call.1} parent=11 // pred_region
          _
        $region16: #{tpu_custom_call.1} parent=11 // pred_fallthru
          _
        // Predicated region
        $region17: #{tpu_custom_call.1} parent=11 // pred_check
          %p124 = pneg %p80
        $region18: #{tpu_custom_call.1} parent=11 // pred_check_branch
          %126 = sbr.rel (%p124) target = $region20
        $region19: #{tpu_custom_call.1} parent=11 // pred_region
          _
        $region20: #{tpu_custom_call.1} parent=11 // pred_fallthru
          _
      $region12: #{tpu_custom_call.1} parent=5 // pred_fallthru
        _
      %p127 = scmp.lt.s32.totalorder %s12, 2
      // Predicated region
      $region21: #{tpu_custom_call.1} parent=5 // pred_check
        %p128 = pneg %p127
      $region22: #{tpu_custom_call.1} parent=5 // pred_check_branch
        %130 = sbr.rel (%p128) target = $region24
      $region23: #{tpu_custom_call.1} parent=5 // pred_region
        // Predicated region
        $region25: #{tpu_custom_call.1} parent=23 // pred_check
          %p131 = pneg %p32
        $region26: #{tpu_custom_call.1} parent=23 // pred_check_branch
          %133 = sbr.rel (%p131) target = $region28
        $region27: #{tpu_custom_call.1} parent=23 // pred_region
          %p134 = scmp.lt.s32.totalorder %s12, 1
          %s135 = scalar_select %p134, %s12, 1
          %s136 = smul.addr %s135, 2
          %s137 = smul.addr %s136, 8
          %s138 = scalar_lea.vmem %s0, %s137
        $region28: #{tpu_custom_call.1} parent=23 // pred_fallthru
          _
      $region24: #{tpu_custom_call.1} parent=5 // pred_fallthru
        _
      %p139 = scmp.le.s32.totalorder 1, %s12
      %p140 = scmp.lt.s32.totalorder %s12, 3
      %p141 = pnand %p139, %p140
      %p142 = pneg %p141
      // Predicated region
      $region29: #{tpu_custom_call.1} parent=5 // pred_check
        _
      $region30: #{tpu_custom_call.1} parent=5 // pred_check_branch
        %144 = sbr.rel (%p141) target = $region32
      $region31: #{tpu_custom_call.1} parent=5 // pred_region
        %s145 = ssub.s32 %s12, 1
        %p146 = scmp.lt.s32.totalorder %s17, 1
        %s147 = scalar_select %p146, %s17, 1
        %s148 = smul.addr %s147, 2
        %s149 = smul.addr %s148, 8
        %s150 = scalar_lea.vmem %s0, %s149
        %p151 = pneg %p38
        %p152 = pneg %p35
        %p153 = pneg %p59
        %p154 = pneg %p56
        %p155 = pneg %p80
        %p156 = pneg %p77
        %p157 = pneg %p106
        %p158 = pneg %p103
        %s159 = sand.u32 %s93, 1
        %s160 = scalar_lea.sflag [#allocation3], %s159
        %s161 = sand.u32 %s93, 1
        %s162 = smul.addr %s161, 16
        %s163 = scalar_lea.vmem [#allocation2], %s162
        %p164 = scmp.lt.s32.totalorder %s17, 1
        %s165 = scalar_select %p164, %s17, 1
        %s166 = smul.addr %s165, 2
        %s167 = smul.addr %s166, 8
        %s168 = scalar_lea.vmem %s0, %s167
        %v169 = vld [vmem:[%s168] sm:$0xff]
        %v170 = vld [vmem:[%s168 + $0x8] sm:$0xff]
        %v171 = vld [vmem:[%s1] sm:$0xff]
        %v172 = vld [vmem:[%s2] sm:$0x1]
        %v174 = vlaneseq
        %v175 = vshrl.u32 %v174, 7
        %v176 = vsub.s32 0, %v175
        %v177 = vrot.slane %v172, %v176
        %vm179 = vcmask 64512
        %v181 = vsel %vm179, %v169, 0
        %v184 = vsel %vm179, %v170, 0
        %186 = vmatprep.subr.mxu0 0.0
        %187 = vmatpush1.msra.mxu0 0.0
        %188 = vmatprep.subr.mxu0 0.0
        %189 = vmatpush1.msra.mxu0 0.0
        %190 = vmatprep.subr.mxu0 0.0
        %191 = vmatpush1.msra.mxu0 0.0
        %192 = vmatprep.subr.mxu0 0.0
        %193 = vmatpush1.msra.mxu0 0.0
        %194 = vmatprep.subr.mxu0 0.0
        %195 = vmatpush1.msra.mxu0 0.0
        %196 = vmatprep.subr.mxu0 0.0
        %197 = vmatpush1.msra.mxu0 0.0
        %198 = vmatprep.subr.mxu0 0.0
        %199 = vmatpush1.msra.mxu0 0.0
        %200 = vmatprep.subr.mxu0 0.0
        %201 = vmatpush1.msra.mxu0 0.0
        %202 = vmatprep.subr.mxu0 0.0
        %203 = vmatpush1.msra.mxu0 0.0
        %204 = vmatprep.subr.mxu0 0.0
        %205 = vmatpush1.msra.mxu0 0.0
        %206 = vmatprep.subr.mxu0 0.0
        %207 = vmatpush1.msra.mxu0 0.0
        %208 = vmatprep.subr.mxu0 0.0
        %209 = vmatpush1.msra.mxu0 0.0
        %210 = vmatprep.subr.mxu0 0.0
        %211 = vmatpush1.msra.mxu0 0.0
        %212 = vmatprep.subr.mxu0 0.0
        %213 = vmatpush1.msra.mxu0 0.0
        %214 = vmatprep.subr.mxu0 0.0
        %215 = vmatpush1.msra.mxu0 0.0
        %216 = vmatprep.subr.mxu0 0.0
        %217 = vmatpush1.msra.mxu0 %v171
        %218 = vmatprep.subr.mxu0 0.0
        %219 = vmatpush2.msra.mxu0 0.0
        %220 = vmatprep.subr.mxu0 0.0
        %221 = vmatpush2.msra.mxu0 0.0
        %222 = vmatprep.subr.mxu0 0.0
        %223 = vmatpush2.msra.mxu0 0.0
        %224 = vmatprep.subr.mxu0 0.0
        %225 = vmatpush2.msra.mxu0 0.0
        %226 = vmatprep.subr.mxu0 0.0
        %227 = vmatpush2.msra.mxu0 0.0
        %228 = vmatprep.subr.mxu0 0.0
        %229 = vmatpush2.msra.mxu0 0.0
        %230 = vmatprep.subr.mxu0 0.0
        %231 = vmatpush2.msra.mxu0 0.0
        %232 = vmatprep.subr.mxu0 0.0
        %233 = vmatpush2.msra.mxu0 0.0
        %234 = vmatprep.subr.mxu0 0.0
        %235 = vmatpush2.msra.mxu0 0.0
        %236 = vmatprep.subr.mxu0 0.0
        %237 = vmatpush2.msra.mxu0 0.0
        %238 = vmatprep.subr.mxu0 0.0
        %239 = vmatpush2.msra.mxu0 0.0
        %240 = vmatprep.subr.mxu0 0.0
        %241 = vmatpush2.msra.mxu0 0.0
        %242 = vmatprep.subr.mxu0 0.0
        %243 = vmatpush2.msra.mxu0 0.0
        %244 = vmatprep.subr.mxu0 0.0
        %245 = vmatpush2.msra.mxu0 0.0
        %246 = vmatprep.subr.mxu0 0.0
        %247 = vmatpush2.msra.mxu0 0.0
        %248 = vmatprep.subr.mxu0 0.0
        %249 = vmatpush2.msra.mxu0 0.0
        %250 = vmatprep.mubr.f32.mxu0 0.0
        %251 = vmatmul.mubr.f32.gmra.mxu0 %v181
        %v252 = vpop.f32.mrf.mxu0
        %v253 = vadd.f32 %v177, %v252
        %v254 = vpop.f32.mrf.mxu0
        %255 = vmatprep.mubr.f32.mxu0 0.0
        %256 = vmatmul.mubr.f32.gmra.mxu0 %v184
        %v257 = vpop.f32.mrf.mxu0
        %v258 = vadd.f32 %v177, %v257
        %v259 = vpop.f32.mrf.mxu0
        %260 = vdwg.mxu0
        %vm261 = vcmask 130048
        %262 = vst.msk [vmem:[%s163] sm:$0xff] %vm261, %v253
        %263 = vst.msk [vmem:[%s163 + $0x8] sm:$0xff] %vm261, %v258
        %s264 = sand.u32 %s93, 1
        %s265 = scalar_lea.sflag [#allocation3], %s264
        %s266 = sand.u32 %s93, 1
        %s267 = smul.addr %s266, 16
        %s268 = scalar_lea.vmem [#allocation2], %s267
        // Predicated region
        $region33: #{tpu_custom_call.1} parent=31 // pred_check
          %p269 = pneg %p103
        $region34: #{tpu_custom_call.1} parent=31 // pred_check_branch
          %271 = sbr.rel (%p269) target = $region36
        $region35: #{tpu_custom_call.1} parent=31 // pred_region
          %s273 = ssub.s32 256, 256
          %274 = vsyncadd %s265, %s273
          %s275 = smul.addr %s17, 2
          %s276 = smul.addr %s275, 128
          %s277 = scalar_lea.hbm %s3, %s276
          %s278 = sshll.u32 %s268, 4
          %s279 = int_to_ptr.vmem [resolvable:$true] %s278
          %284 = dma.vmem_to_hbm [thread:$0]  %s279, 256, %s277, %s265, 128, 128, 8
        $region36: #{tpu_custom_call.1} parent=31 // pred_fallthru
          _
      $region32: #{tpu_custom_call.1} parent=5 // pred_fallthru
        _
      %p285 = scmp.le.s32.totalorder 2, %s12
      // Predicated region
      $region37: #{tpu_custom_call.1} parent=5 // pred_check
        %p286 = pneg %p285
      $region38: #{tpu_custom_call.1} parent=5 // pred_check_branch
        %288 = sbr.rel (%p286) target = $region40
      $region39: #{tpu_custom_call.1} parent=5 // pred_region
        %s289 = ssub.s32 %s12, 2
        // Predicated region
        $region41: #{tpu_custom_call.1} parent=39 // pred_check
          %p290 = pneg %p109
        $region42: #{tpu_custom_call.1} parent=39 // pred_check_branch
          %292 = sbr.rel (%p290) target = $region44
        $region43: #{tpu_custom_call.1} parent=39 // pred_region
          %s293 = sand.u32 %s94, 1
          %s294 = scalar_lea.sflag [#allocation3], %s293
          %s295 = sand.u32 %s94, 1
          %s296 = smul.addr %s295, 16
          %s297 = scalar_lea.vmem [#allocation2], %s296
          %298 = dma.done %s294, 256
        $region44: #{tpu_custom_call.1} parent=39 // pred_fallthru
          _
      $region40: #{tpu_custom_call.1} parent=5 // pred_fallthru
        _
    $region6: #{tpu_custom_call.1} parent=1 // loop_footer
      %s16 = sadd.s32 1, %s12
    $region7: #{tpu_custom_call.1} parent=1 // loop_footer_branch
      %11 = sbr.rel target = $region3
    $region8: #{tpu_custom_call.1} parent=1 // loop_exit
      _
    %299 = vsyncpa [#allocation3], 1
    %s300 = scalar_lea.sflag [#allocation3], 1
    %301 = vsyncpa %s300, 1

</llo_original>
